<compile_context>
chip_gen: v6e
topology: v6e:2x2x1
jax: 0.10.0
libtpu: 0.0.40
codegen_flags: <defaults>
</compile_context>

<pallas_src>
import functools

import jax
import jax.numpy as jnp
from jax import lax
from jax.experimental import pallas as pl
from jax.experimental.pallas import tpu as pltpu

SMOOTHING = 0.1
NUM_CLASSES = 5


def _label_smoothing_ce_kernel(pred_ref, tgt_ref, partial_ref, *,
                               n_rows, block_n, num_classes, smoothing):
    """One grid step: (C, block_n) logits tile -> one (1,1,1) partial loss sum."""
    i = pl.program_id(0)

    x = pred_ref[...].astype(jnp.float32)              # (C, bn), on-chip cast
    tgt = tgt_ref[...]                                  # (1, bn) int32

    # Numerically stable log-sum-exp over the class (sublane) axis.
    m = jnp.max(x, axis=0, keepdims=True)               # (1, bn)
    shifted = x - m                                      # (C, bn)
    lse = jnp.log(jnp.sum(jnp.exp(shifted), axis=0, keepdims=True))  # (1, bn)

    # Fused smoothing weights: confidence*onehot + smoothing/C.
    confidence = 1.0 - smoothing
    uniform_w = smoothing / num_classes
    cls = lax.broadcasted_iota(jnp.int32, x.shape, 0)    # class id per sublane
    w = jnp.where(cls == tgt, confidence + uniform_w, uniform_w)     # (C, bn)

    # confidence*nll + smoothing*smooth  ==  lse - sum_k(w_k * shifted_k).
    loss_row = lse - jnp.sum(w * shifted, axis=0, keepdims=True)     # (1, bn)

    def write_partial(v):
        partial_ref[...] = jnp.sum(v, axis=-1, keepdims=True).reshape(1, 1, 1)

    if n_rows % block_n == 0:
        # Every tile is full: no masking work at all.
        write_partial(loss_row)
    else:
        is_last = i == pl.num_programs(0) - 1

        @pl.when(jnp.logical_not(is_last))
        def _():
            write_partial(loss_row)

        @pl.when(is_last)
        def _():
            # Mask padded lanes of the final (partial) tile out of the sum.
            col = i * block_n + lax.broadcasted_iota(jnp.int32, loss_row.shape, 1)
            write_partial(jnp.where(col < n_rows, loss_row, 0.0))


def label_smoothing_cross_entropy(pred, target, *, smoothing=SMOOTHING,
                                  block_n=8192):
    """pred: (N, C) float (any dtype), target: (N,) int -> scalar f32 loss."""
    n, c = pred.shape

    # Class-on-sublane layout (one cheap XLA transpose upstream).
    pred_t = pred.T                                      # (C, N)
    target_2d = target.astype(jnp.int32).reshape(1, n)   # lane-dense target

    # block_n must be a multiple of 128, or the full extent of N.
    if block_n >= n:
        block_n = n
    else:
        block_n = max(128, (block_n // 128) * 128)
    num_tiles = pl.cdiv(n, block_n)

    kernel = functools.partial(
        _label_smoothing_ce_kernel,
        n_rows=n, block_n=block_n, num_classes=c, smoothing=smoothing)

    cost = pl.CostEstimate(
        flops=10 * n * c,
        transcendentals=n * (c + 1),
        bytes_accessed=pred.size * pred.dtype.itemsize + n * 4 + num_tiles * 4,
    )

    partials = pl.pallas_call(
        kernel,
        out_shape=jax.ShapeDtypeStruct((num_tiles, 1, 1), jnp.float32),
        grid=(num_tiles,),
        in_specs=[
            pl.BlockSpec((c, block_n), lambda i: (0, i)),   # logits tile (C, bn)
            pl.BlockSpec((1, block_n), lambda i: (0, i)),   # target tile (1, bn)
        ],
        out_specs=pl.BlockSpec((1, 1, 1), lambda i: (i, 0, 0)),
        compiler_params=pltpu.CompilerParams(
            dimension_semantics=("parallel",),
            vmem_limit_bytes=32 * 1024 * 1024,
        ),
        cost_estimate=cost,
    )(pred_t, target_2d)

    # Exactly one division by the true N (no mean-of-means over unequal tiles).
    return jnp.sum(partials) / jnp.float32(n)


def _reference(pred, target, smoothing=SMOOTHING):
    confidence = 1.0 - smoothing
    logprobs = jax.nn.log_softmax(pred.astype(jnp.float32), axis=-1)
    nll = -jnp.take_along_axis(
        logprobs, target[:, None].astype(jnp.int32), axis=-1)[:, 0]
    smooth = -jnp.mean(logprobs, axis=-1)
    return jnp.mean(confidence * nll + smoothing * smooth)


if __name__ == "__main__":
    key = jax.random.PRNGKey(0)
    kp, kt = jax.random.split(key)

    N = 300  # not a multiple of the tile -> exercises the masked last tile
    pred = jax.random.normal(kp, (N, NUM_CLASSES), dtype=jnp.float32)
    target = jax.random.randint(kt, (N,), 0, NUM_CLASSES, dtype=jnp.int32)
    ref = _reference(pred, target)

    # Multi-tile path: 3 tiles of 128 cols, last one partial (masked in-kernel).
    loss = jax.block_until_ready(
        label_smoothing_cross_entropy(pred, target, block_n=128))
    assert jnp.allclose(loss, ref, atol=1e-5, rtol=1e-5), (loss, ref)

    # Default (large block_n): single full-extent tile, static no-mask path.
    loss_big = jax.block_until_ready(
        label_smoothing_cross_entropy(pred, target))
    assert jnp.allclose(loss_big, ref, atol=1e-5, rtol=1e-5), (loss_big, ref)

    # Native bf16 input path: no wrapper-side f32 copy, cast happens on-chip.
    pred_bf16 = pred.astype(jnp.bfloat16)
    loss_bf = jax.block_until_ready(
        label_smoothing_cross_entropy(pred_bf16, target, block_n=128))
    ref_bf = _reference(pred_bf16, target)
    assert jnp.allclose(loss_bf, ref_bf, atol=1e-5, rtol=1e-5), (loss_bf, ref_bf)

    print("KERNEL_OK")
</pallas_src>

<mosaic_0001>
module attributes {stable_mosaic.version = 11 : i64} {
  func.func @_label_smoothing_ce_kernel(%arg0: i32, %arg1: memref<5x128xf32, #tpu.memory_space<vmem>>, %arg2: memref<1x128xi32, #tpu.memory_space<vmem>>, %arg3: memref<1x1x1xf32, #tpu.memory_space<vmem>>) attributes {dimension_semantics = [#tpu.dimension_semantics<parallel>], iteration_bounds = array<i64: 3>, scalar_prefetch = 0 : i64, scratch_operands = 0 : i64, tpu.core_type = #tpu.core_type<tc>, window_params = [{transform_indices = @transform_0, window_bounds = array<i64: 5, 128>}, {transform_indices = @transform_1, window_bounds = array<i64: 1, 128>}, {transform_indices = @transform_2, window_bounds = array<i64: 1, 1, 1>}]} {
    %c0 = arith.constant 0 : index
    %c0_0 = arith.constant 0 : index
    %0 = vector.load %arg1[%c0, %c0_0] : memref<5x128xf32, #tpu.memory_space<vmem>>, vector<5x128xf32>
    %c0_1 = arith.constant 0 : index
    %c0_2 = arith.constant 0 : index
    %1 = vector.load %arg2[%c0_1, %c0_2] : memref<1x128xi32, #tpu.memory_space<vmem>>, vector<1x128xi32>
    %cst = arith.constant dense<0xFF800000> : vector<128xf32>
    %2 = vector.multi_reduction <maximumf>, %0, %cst [0] : vector<5x128xf32> to vector<128xf32>
    %3 = vector.shape_cast %2 : vector<128xf32> to vector<1x128xf32>
    %4 = vector.broadcast %3 : vector<1x128xf32> to vector<5x128xf32>
    %5 = arith.subf %0, %4 : vector<5x128xf32>
    %6 = math.exp %5 : vector<5x128xf32>
    %cst_3 = arith.constant dense<0.000000e+00> : vector<128xf32>
    %7 = vector.multi_reduction <add>, %6, %cst_3 [0] : vector<5x128xf32> to vector<128xf32>
    %8 = vector.shape_cast %7 : vector<128xf32> to vector<1x128xf32>
    %9 = math.log %8 : vector<1x128xf32>
    %10 = tpu.iota {dimensions = array<i32: 0>} : vector<5x128xi32>
    %11 = vector.broadcast %1 : vector<1x128xi32> to vector<5x128xi32>
    %12 = arith.cmpi eq, %10, %11 : vector<5x128xi32>
    %cst_4 = arith.constant 9.200000e-01 : f32
    %cst_5 = arith.constant 2.000000e-02 : f32
    %13 = vector.broadcast %cst_4 : f32 to vector<5x128xf32>
    %14 = vector.broadcast %cst_5 : f32 to vector<5x128xf32>
    %15 = arith.select %12, %13, %14 : vector<5x128xi1>, vector<5x128xf32>
    %16 = arith.mulf %15, %5 : vector<5x128xf32>
    %cst_6 = arith.constant dense<0.000000e+00> : vector<128xf32>
    %17 = vector.multi_reduction <add>, %16, %cst_6 [0] : vector<5x128xf32> to vector<128xf32>
    %18 = vector.shape_cast %17 : vector<128xf32> to vector<1x128xf32>
    %19 = arith.subf %9, %18 : vector<1x128xf32>
    %c2_i32 = arith.constant 2 : i32
    %20 = arith.cmpi eq, %arg0, %c2_i32 : i32
    %true = arith.constant true
    %21 = arith.xori %20, %true : i1
    %22 = arith.extui %21 : i1 to i32
    %c0_i32 = arith.constant 0 : i32
    %23 = arith.cmpi ne, %22, %c0_i32 : i32
    scf.if %23 {
      %cst_8 = arith.constant dense<0.000000e+00> : vector<1xf32>
      %26 = vector.multi_reduction <add>, %19, %cst_8 [1] : vector<1x128xf32> to vector<1xf32>
      %27 = vector.shape_cast %26 : vector<1xf32> to vector<1x1xf32>
      %28 = vector.shape_cast %27 : vector<1x1xf32> to vector<1x1x1xf32>
      %c0_9 = arith.constant 0 : index
      %c0_10 = arith.constant 0 : index
      %c0_11 = arith.constant 0 : index
      %29 = vector.load %arg3[%c0_9, %c0_10, %c0_11] : memref<1x1x1xf32, #tpu.memory_space<vmem>>, vector<1x1x1xf32>
      tpu.vector_store %arg3[%c0_9, %c0_10, %c0_11], %28 {strides = array<i32>} : memref<1x1x1xf32, #tpu.memory_space<vmem>>, vector<1x1x1xf32>,
    } else {
    }
    %24 = arith.extui %20 : i1 to i32
    %c0_i32_7 = arith.constant 0 : i32
    %25 = arith.cmpi ne, %24, %c0_i32_7 : i32
    scf.if %25 {
      %c128_i32 = arith.constant 128 : i32
      %26 = arith.muli %arg0, %c128_i32 : i32
      %27 = tpu.iota {dimensions = array<i32: 1>} : vector<1x128xi32>
      %28 = vector.broadcast %26 : i32 to vector<1x128xi32>
      %29 = arith.addi %28, %27 : vector<1x128xi32>
      %c300_i32 = arith.constant 300 : i32
      %30 = vector.broadcast %c300_i32 : i32 to vector<1x128xi32>
      %31 = arith.cmpi slt, %29, %30 : vector<1x128xi32>
      %cst_8 = arith.constant 0.000000e+00 : f32
      %32 = vector.broadcast %cst_8 : f32 to vector<1x128xf32>
      %33 = arith.select %31, %19, %32 : vector<1x128xi1>, vector<1x128xf32>
      %cst_9 = arith.constant dense<0.000000e+00> : vector<1xf32>
      %34 = vector.multi_reduction <add>, %33, %cst_9 [1] : vector<1x128xf32> to vector<1xf32>
      %35 = vector.shape_cast %34 : vector<1xf32> to vector<1x1xf32>
      %36 = vector.shape_cast %35 : vector<1x1xf32> to vector<1x1x1xf32>
      %c0_10 = arith.constant 0 : index
      %c0_11 = arith.constant 0 : index
      %c0_12 = arith.constant 0 : index
      %37 = vector.load %arg3[%c0_10, %c0_11, %c0_12] : memref<1x1x1xf32, #tpu.memory_space<vmem>>, vector<1x1x1xf32>
      tpu.vector_store %arg3[%c0_10, %c0_11, %c0_12], %36 {strides = array<i32>} : memref<1x1x1xf32, #tpu.memory_space<vmem>>, vector<1x1x1xf32>,
    } else {
    }
    return
  }
  func.func @transform_0(%arg0: i32) -> (i32, i32) {
    %c0_i32 = arith.constant 0 : i32
    %c0_i32_0 = arith.constant 0 : i32
    return %c0_i32, %arg0 : i32, i32
  }
  func.func @transform_1(%arg0: i32) -> (i32, i32) {
    %c0_i32 = arith.constant 0 : i32
    %c0_i32_0 = arith.constant 0 : i32
    return %c0_i32, %arg0 : i32, i32
  }
  func.func @transform_2(%arg0: i32) -> (i32, i32, i32) {
    %c0_i32 = arith.constant 0 : i32
    %c0_i32_0 = arith.constant 0 : i32
    %c0_i32_1 = arith.constant 0 : i32
    return %arg0, %c0_i32, %c0_i32_0 : i32, i32, i32
  }
}

</mosaic_0001>

<llo_original>
// kernel: tpu_custom_call.1
$region0: #{tpu_custom_call.1}
  #allocation0 [shape = 'u32[]', space=smem, size = 0x4, offset = 0x4, fixed_abs, tag = 'smem constant byte address 0x4 - core index']
  #allocation1 [shape = 'u32[144,128]{1,0:T(1,128)}', space=vmem, size = 0x12000, scoped, tag = 'internal scratch']
  %s0 = inlined_call_operand.hbm [shape: f32[5,300], index: 0, kind: input, shape index: {}]
  %s1 = inlined_call_operand.hbm [shape: s32[1,300], index: 1, kind: input, shape index: {}]
  %s2 = inlined_call_operand.vmem [shape: f32[3,1,1], index: 2, kind: output, shape index: {}]
  %s3 = sld [smem:[#allocation0]]
  $region57: #{tpu_custom_call.1} parent=0
    _
  %s5 = ssub.s32 1, %s3
  %s6 = scalar_select 0, %s5, %s3
  $region1: #{tpu_custom_call.1} parent=0
    #allocation2 [shape = 'u8[8192]{0}', space=vmem, size = 0x2000, scoped, tag = 'input window, operand 0']
    #allocation3 [shape = 's32[2]{0}', space=sflag, size = 0x8, scoped, tag = 'scoped memory for tpu_custom_call.1']
    #allocation4 [shape = 'u8[1024]{0}', space=vmem, size = 0x400, scoped, tag = 'input window, operand 1']
    #allocation5 [shape = 's32[2]{0}', space=sflag, size = 0x8, scoped, tag = 'scoped memory for tpu_custom_call.1']
    %7 = vsyncpa [#allocation3], 0
    %s8 = scalar_lea.sflag [#allocation3], 1
    %9 = vsyncpa %s8, 0
    %10 = vsyncpa [#allocation5], 0
    %s11 = scalar_lea.sflag [#allocation5], 1
    %12 = vsyncpa %s11, 0
    loop: start=0, step=1, limit=5
    $region2: #{tpu_custom_call.1} parent=1 // loop_pre_header
      _
    $region3: #{tpu_custom_call.1} parent=1 // loop_header
      %s14 = sphi 0, %s18
      %p15 = scmp.ge.s32.totalorder %s14, 5
      %s24 = sphi 0, %s26
      %s27 = sphi 0, %s24
      %s28 = sphi 0, %s27
      %s44 = sphi 0, %s28
      %s50 = sphi 0, %s52
      %s53 = sphi 0, %s50
      %s54 = sphi 0, %s53
      %s70 = sphi 0, %s54
      %s76 = sphi 0, %s78
      %s79 = sphi 0, %s76
      %s80 = sphi 0, %s79
      %s96 = sphi 0, %s80
    $region4: #{tpu_custom_call.1} parent=1 // loop_header_branch
      %17 = sbr.rel (%p15) target = $region8
    $region5: #{tpu_custom_call.1} parent=1 // loop_body
      %s19 = ssub.s32 %s14, 1
      %s20 = ssub.s32 %s14, 2
      %s21 = sadd.s32 %s14, 1
      %s22 = ssub.s32 %s14, %s21
      %p23 = scmp.eq.s32.totalorder %s22, 0
      %s25 = sadd.s32 %s24, 1
      %s26 = scalar_select %p23, %s24, %s25
      %p29 = pneg %p23
      %p30 = scmp.eq.s32.totalorder %s14, 2
      %p31 = por %p29, %p30
      %p32 = scmp.ne.s32.totalorder %s24, %s27
      %p33 = scmp.eq.s32.totalorder %s14, 0
      %p34 = por %p32, %p33
      %p35 = scmp.ne.s32.totalorder %s24, %s27
      %p36 = scmp.eq.s32.totalorder %s19, 2
      %p37 = por %p35, %p36
      %p38 = scmp.ne.s32.totalorder %s27, %s28
      %p39 = scmp.eq.s32.totalorder %s19, 0
      %p40 = por %p38, %p39
      %p41 = scmp.ne.s32.totalorder %s27, %s28
      %p42 = scmp.eq.s32.totalorder %s20, 2
      %p43 = por %p41, %p42
      %p45 = scmp.ne.s32.totalorder %s28, %s44
      %p46 = scmp.eq.s32.totalorder %s20, 0
      %p47 = por %p45, %p46
      %s48 = ssub.s32 %s14, %s21
      %p49 = scmp.eq.s32.totalorder %s48, 0
      %s51 = sadd.s32 %s50, 1
      %s52 = scalar_select %p49, %s50, %s51
      %p55 = pneg %p49
      %p56 = scmp.eq.s32.totalorder %s14, 2
      %p57 = por %p55, %p56
      %p58 = scmp.ne.s32.totalorder %s50, %s53
      %p59 = scmp.eq.s32.totalorder %s14, 0
      %p60 = por %p58, %p59
      %p61 = scmp.ne.s32.totalorder %s50, %s53
      %p62 = scmp.eq.s32.totalorder %s19, 2
      %p63 = por %p61, %p62
      %p64 = scmp.ne.s32.totalorder %s53, %s54
      %p65 = scmp.eq.s32.totalorder %s19, 0
      %p66 = por %p64, %p65
      %p67 = scmp.ne.s32.totalorder %s53, %s54
      %p68 = scmp.eq.s32.totalorder %s20, 2
      %p69 = por %p67, %p68
      %p71 = scmp.ne.s32.totalorder %s54, %s70
      %p72 = scmp.eq.s32.totalorder %s20, 0
      %p73 = por %p71, %p72
      %s74 = ssub.s32 %s14, %s21
      %p75 = scmp.eq.s32.totalorder %s74, 0
      %s77 = sadd.s32 %s76, 1
      %s78 = scalar_select %p75, %s76, %s77
      %p81 = pneg %p75
      %p82 = scmp.eq.s32.totalorder %s14, 2
      %p83 = por %p81, %p82
      %p84 = scmp.ne.s32.totalorder %s76, %s79
      %p85 = scmp.eq.s32.totalorder %s14, 0
      %p86 = por %p84, %p85
      %p87 = scmp.ne.s32.totalorder %s76, %s79
      %p88 = scmp.eq.s32.totalorder %s19, 2
      %p89 = por %p87, %p88
      %p90 = scmp.ne.s32.totalorder %s79, %s80
      %p91 = scmp.eq.s32.totalorder %s19, 0
      %p92 = por %p90, %p91
      %p93 = scmp.ne.s32.totalorder %s79, %s80
      %p94 = scmp.eq.s32.totalorder %s20, 2
      %p95 = por %p93, %p94
      %p97 = scmp.ne.s32.totalorder %s80, %s96
      %p98 = scmp.eq.s32.totalorder %s20, 0
      %p99 = por %p97, %p98
      %p100 = scmp.le.s32.totalorder 1, %s14
      %p101 = scmp.lt.s32.totalorder %s14, 4
      %p102 = pnand %p100, %p101
      %p103 = pneg %p102
      // Predicated region
      $region9: #{tpu_custom_call.1} parent=5 // pred_check
        _
      $region10: #{tpu_custom_call.1} parent=5 // pred_check_branch
        %105 = sbr.rel (%p102) target = $region12
      $region11: #{tpu_custom_call.1} parent=5 // pred_region
        %s106 = ssub.s32 %s14, 1
      $region12: #{tpu_custom_call.1} parent=5 // pred_fallthru
        _
      %p107 = scmp.lt.s32.totalorder %s14, 3
      // Predicated region
      $region13: #{tpu_custom_call.1} parent=5 // pred_check
        %p108 = pneg %p107
      $region14: #{tpu_custom_call.1} parent=5 // pred_check_branch
        %110 = sbr.rel (%p108) target = $region16
      $region15: #{tpu_custom_call.1} parent=5 // pred_region
        // Predicated region
        $region17: #{tpu_custom_call.1} parent=15 // pred_check
          %p111 = pneg %p34
        $region18: #{tpu_custom_call.1} parent=15 // pred_check_branch
          %113 = sbr.rel (%p111) target = $region20
        $region19: #{tpu_custom_call.1} parent=15 // pred_region
          %s114 = sand.u32 %s24, 1
          %s115 = scalar_lea.sflag [#allocation3], %s114
          %s116 = sand.u32 %s24, 1
          %s117 = smul.addr %s116, 8
          %s118 = scalar_lea.vmem [#allocation2], %s117
          %s120 = ssub.s32 128, 128
          %121 = vsyncadd %s115, %s120
          %s122 = smul.addr %s14, 128
          %s123 = scalar_lea.hbm %s0, %s122
          %s125 = sshll.u32 %s118, 4
          %s126 = int_to_ptr.vmem [resolvable:$true] %s125
          %128 = dma.hbm_to_vmem [thread:$0]  %s123, 128, %s126, %s115
        $region20: #{tpu_custom_call.1} parent=15 // pred_fallthru
          _
        // Predicated region
        $region21: #{tpu_custom_call.1} parent=15 // pred_check
          %p129 = pneg %p60
        $region22: #{tpu_custom_call.1} parent=15 // pred_check_branch
          %131 = sbr.rel (%p129) target = $region24
        $region23: #{tpu_custom_call.1} parent=15 // pred_region
          %s132 = sand.u32 %s50, 1
          %s133 = scalar_lea.sflag [#allocation5], %s132
          %s134 = sand.u32 %s50, 1
          %s135 = scalar_lea.vmem [#allocation4], %s134
          %s137 = ssub.s32 16, 16
          %138 = vsyncadd %s133, %s137
          %s139 = smul.addr %s14, 16
          %s140 = scalar_lea.hbm %s1, %s139
          %s142 = sshll.u32 %s135, 4
          %s143 = int_to_ptr.vmem [resolvable:$true] %s142
          %145 = dma.hbm_to_vmem [thread:$0]  %s140, 16, %s143, %s133
        $region24: #{tpu_custom_call.1} parent=15 // pred_fallthru
          _
      $region16: #{tpu_custom_call.1} parent=5 // pred_fallthru
        _
      %p146 = scmp.le.s32.totalorder 1, %s14
      %p147 = scmp.lt.s32.totalorder %s14, 4
      %p148 = pnand %p146, %p147
      %p149 = pneg %p148
      // Predicated region
      $region25: #{tpu_custom_call.1} parent=5 // pred_check
        _
      $region26: #{tpu_custom_call.1} parent=5 // pred_check_branch
        %151 = sbr.rel (%p148) target = $region28
      $region27: #{tpu_custom_call.1} parent=5 // pred_region
        %s152 = ssub.s32 %s14, 1
        %s153 = sand.u32 %s27, 1
        %s154 = scalar_lea.sflag [#allocation3], %s153
        %s155 = sand.u32 %s27, 1
        %s156 = smul.addr %s155, 8
        %s157 = scalar_lea.vmem [#allocation2], %s156
        // Predicated region
        $region29: #{tpu_custom_call.1} parent=27 // pred_check
          %p158 = pneg %p40
        $region30: #{tpu_custom_call.1} parent=27 // pred_check_branch
          %160 = sbr.rel (%p158) target = $region32
        $region31: #{tpu_custom_call.1} parent=27 // pred_region
          %161 = dma.done %s154, 128
        $region32: #{tpu_custom_call.1} parent=27 // pred_fallthru
          _
        %s162 = sand.u32 %s53, 1
        %s163 = scalar_lea.sflag [#allocation5], %s162
        %s164 = sand.u32 %s53, 1
        %s165 = scalar_lea.vmem [#allocation4], %s164
        // Predicated region
        $region33: #{tpu_custom_call.1} parent=27 // pred_check
          %p166 = pneg %p66
        $region34: #{tpu_custom_call.1} parent=27 // pred_check_branch
          %168 = sbr.rel (%p166) target = $region36
        $region35: #{tpu_custom_call.1} parent=27 // pred_region
          %169 = dma.done %s163, 16
        $region36: #{tpu_custom_call.1} parent=27 // pred_fallthru
          _
        %s170 = sand.u32 %s27, 1
        %s171 = scalar_lea.sflag [#allocation3], %s170
        %s172 = sand.u32 %s27, 1
        %s173 = smul.addr %s172, 8
        %s174 = scalar_lea.vmem [#allocation2], %s173
        %p175 = pneg %p40
        %p176 = pneg %p37
        %s177 = sand.u32 %s53, 1
        %s178 = scalar_lea.sflag [#allocation5], %s177
        %s179 = sand.u32 %s53, 1
        %s180 = scalar_lea.vmem [#allocation4], %s179
        %p181 = pneg %p66
        %p182 = pneg %p63
        %p183 = pneg %p92
        %p184 = pneg %p89
        %p185 = scmp.lt.s32.totalorder %s19, 2
        %s186 = scalar_select %p185, %s19, 2
        %s187 = scalar_lea.vmem %s2, %s186
        %p188 = scmp.lt.s32.totalorder %s19, 2
        %s189 = scalar_select %p188, %s19, 2
        %s190 = scalar_lea.vmem %s2, %s189
        %v191 = vld [vmem:[%s157] sm:$0x1f]
        %v192 = vld [vmem:[%s165] sm:$0x1]
        %vm193 = vcmask 1044480
        %v194 = vsel %vm193, %v191, -inf
        %v195 = vrot.slane %v194, 4
        %v196 = vmax.f32 %v194, %v195
        %v197 = vrot.slane %v196, 2
        %v198 = vmax.f32 %v196, %v197
        %v199 = vrot.slane %v198, 1
        %v200 = vmax.f32 %v198, %v199
        %v201 = vsub.f32 %v191, %v200
        %v202 = vmul.f32 %v201, 1.442695
        %v203 = vpow.pop %v202
        %v204 = vsel %vm193, %v203, 0.0
        %v205 = vrot.slane %v204, 4
        %v206 = vadd.f32 %v204, %v205
        %v207 = vrot.slane %v206, 2
        %v208 = vadd.f32 %v206, %v207
        %v209 = vrot.slane %v208, 1
        %v210 = vadd.f32 %v208, %v209
        %v211 = vlog2.pop %v210
        %v212 = vmul.f32 %v211, 0.6931472
        %v213 = vlaneseq
        %v214 = vshrl.u32 %v213, 7
        %v215 = vlaneseq
        %v216 = vshrl.u32 %v215, 7
        %v217 = vsub.s32 0, %v216
        %v218 = vrot.slane %v192, %v217
        %vm219 = vcmp.eq.s32.totalorder %v214, %v218
        %v220 = vsel %vm219, 0.92, 0.02
        %v221 = vmul.f32 %v220, %v201
        %v222 = vsel %vm193, %v221, 0.0
        %v223 = vrot.slane %v222, 4
        %v224 = vadd.f32 %v222, %v223
        %v225 = vrot.slane %v224, 2
        %v226 = vadd.f32 %v224, %v225
        %v227 = vrot.slane %v226, 1
        %v228 = vadd.f32 %v226, %v227
        %v229 = vsub.f32 %v212, %v228
        %p230 = scmp.eq.s32.totalorder %s19, 2
        %p231 = scmp.ne.s32.totalorder %s19, 2
        // Predicated region
        $region37: #{tpu_custom_call.1} parent=27 // pred_check
          %p232 = pneg %p231
        $region38: #{tpu_custom_call.1} parent=27 // pred_check_branch
          %234 = sbr.rel (%p232) target = $region40
        $region39: #{tpu_custom_call.1} parent=27 // pred_region
          %235 = vadd.xlane.f32.xlu0 %v229
          %v236 = vpop.xlane.xlu0 %235
          %vm237 = vcmask 0
          %238 = vst.msk [vmem:[%s190] sm:$0x1] %vm237, %v236
        $region40: #{tpu_custom_call.1} parent=27 // pred_fallthru
          _
        // Predicated region
        $region41: #{tpu_custom_call.1} parent=27 // pred_check
          %p239 = pneg %p230
        $region42: #{tpu_custom_call.1} parent=27 // pred_check_branch
          %241 = sbr.rel (%p239) target = $region44
        $region43: #{tpu_custom_call.1} parent=27 // pred_region
          %s242 = smul.u32 %s19, 128
          %v243 = vlaneseq
          %v244 = vand.u32 %v243, 127
          %v245 = vstv %s242
          %v246 = vadd.s32 %v245, %v244
          %vm247 = vcmp.lt.s32.totalorder %v246, 300
          %v248 = vsel %vm247, %v229, 0.0
          %249 = vadd.xlane.f32.xlu0 %v248
          %v250 = vpop.xlane.xlu0 %249
          %vm251 = vcmask 0
          %252 = vst.msk [vmem:[%s190] sm:$0x1] %vm251, %v250
        $region44: #{tpu_custom_call.1} parent=27 // pred_fallthru
          _
        %p253 = scmp.lt.s32.totalorder %s19, 2
        %s254 = scalar_select %p253, %s19, 2
        %s255 = scalar_lea.vmem %s2, %s254
        // Predicated region
        $region45: #{tpu_custom_call.1} parent=27 // pred_check
          %p256 = pneg %p89
        $region46: #{tpu_custom_call.1} parent=27 // pred_check_branch
          %258 = sbr.rel (%p256) target = $region48
        $region47: #{tpu_custom_call.1} parent=27 // pred_region
          _
        $region48: #{tpu_custom_call.1} parent=27 // pred_fallthru
          _
      $region28: #{tpu_custom_call.1} parent=5 // pred_fallthru
        _
      %p259 = scmp.le.s32.totalorder 2, %s14
      // Predicated region
      $region49: #{tpu_custom_call.1} parent=5 // pred_check
        %p260 = pneg %p259
      $region50: #{tpu_custom_call.1} parent=5 // pred_check_branch
        %262 = sbr.rel (%p260) target = $region52
      $region51: #{tpu_custom_call.1} parent=5 // pred_region
        %s263 = ssub.s32 %s14, 2
        // Predicated region
        $region53: #{tpu_custom_call.1} parent=51 // pred_check
          %p264 = pneg %p95
        $region54: #{tpu_custom_call.1} parent=51 // pred_check_branch
          %266 = sbr.rel (%p264) target = $region56
        $region55: #{tpu_custom_call.1} parent=51 // pred_region
          %p267 = scmp.lt.s32.totalorder %s20, 2
          %s268 = scalar_select %p267, %s20, 2
          %s269 = scalar_lea.vmem %s2, %s268
        $region56: #{tpu_custom_call.1} parent=51 // pred_fallthru
          _
      $region52: #{tpu_custom_call.1} parent=5 // pred_fallthru
        _
    $region6: #{tpu_custom_call.1} parent=1 // loop_footer
      %s18 = sadd.s32 1, %s14
    $region7: #{tpu_custom_call.1} parent=1 // loop_footer_branch
      %13 = sbr.rel target = $region3
    $region8: #{tpu_custom_call.1} parent=1 // loop_exit
      _
    %270 = vsyncpa [#allocation3], 1
    %s271 = scalar_lea.sflag [#allocation3], 1
    %272 = vsyncpa %s271, 1
    %273 = vsyncpa [#allocation5], 1
    %s274 = scalar_lea.sflag [#allocation5], 1
    %275 = vsyncpa %s274, 1

</llo_original>
